<compile_context>
chip_gen: v5e
topology: v5e:2x2
jax: 0.10.0
libtpu: 0.0.40
codegen_flags: <defaults>
</compile_context>

<pallas_src>
import math
import jax
import jax.numpy as jnp
from jax import lax
from jax.experimental import pallas as pl
from jax.experimental.pallas import tpu as pltpu


def _round_up(x, m):
    return ((x + m - 1) // m) * m


def _pick_tile(padded_dim, cap):
    """Largest multiple-of-128 divisor of `padded_dim` that is <= cap."""
    n = padded_dim // 128
    best = 128
    for d in range(1, n + 1):
        if n % d == 0 and 128 * d <= cap:
            best = 128 * d
    return best


# ----------------------------------------------------------------------------- kernel
def _bayes_linear_kernel(x_ref, zk_ref, wmu_ref, wrho_ref, lam_ref,
                         bmu_ref, bsig2_ref, eps_ref, out_ref,
                         eacc_ref, vacc_ref):
    """One (Out-tile, In-tile) grid step of the fused BayesianLinear forward."""
    k = pl.program_id(1)

    @pl.when(k == 0)
    def _init():
        eacc_ref[...] = jnp.zeros_like(eacc_ref)
        vacc_ref[...] = jnp.zeros_like(vacc_ref)

    f32 = jnp.float32
    # Batch-side operands (tiny: B x TI).  z_k is folded onto the batch side:
    #   x @ (wmu*alpha*zk).T                 == (x*zk)   @ (wmu*alpha).T
    #   x^2 @ (alpha*(1-alpha)*(wmu*zk)^2).T == (x*zk)^2 @ (alpha*(1-alpha)*wmu^2).T
    x = x_ref[...].astype(f32)                       # (B, TI)
    zk = zk_ref[...].astype(f32)                     # (1, TI) -> broadcasts over rows
    xz = x * zk
    xsq = x * x

    dn = (((1,), (1,)), ((), ()))                    # contract last dims (NT, no .T copy)

    # alpha = sigmoid(lambda), exact, single EUP transcendental (tanh).
    lam = lam_ref[...].astype(f32)
    alpha = 0.5 * jnp.tanh(0.5 * lam) + 0.5

    # --- mean path first (shorter live range for the mean-path operand) -------------
    wmu = wmu_ref[...].astype(f32)
    eacc_ref[...] += lax.dot_general(xz, wmu * alpha, dn, preferred_element_type=f32)

    # --- variance path ---------------------------------------------------------------
    rho = wrho_ref[...].astype(f32)
    # numerically stable softplus: max(rho, 0) + log1p(exp(-|rho|))
    wsig = jnp.maximum(rho, 0.0) + jnp.log1p(jnp.exp(-jnp.abs(rho)))
    v = lax.dot_general(xsq, alpha * (wsig * wsig), dn, preferred_element_type=f32)
    v += lax.dot_general(xz * xz, (alpha * (1.0 - alpha)) * (wmu * wmu), dn,
                         preferred_element_type=f32)
    vacc_ref[...] += v

    @pl.when(k == pl.num_programs(1) - 1)
    def _finalize():
        e_b = eacc_ref[...] + bmu_ref[...].astype(f32)
        var_b = jnp.maximum(vacc_ref[...] + bsig2_ref[...].astype(f32), 0.0)
        out_ref[...] = (e_b + jnp.sqrt(var_b) * eps_ref[...].astype(f32)
                        ).astype(out_ref.dtype)


def pallas_bayes_linear(x, weight_mu, weight_rho, lambdal, z_k,
                        bias_mu, bias_sigma, eps, *,
                        to_cap=512, ti_cap=2048, vmem_limit_bytes=48 << 20):
    """activations = x @ E[W].T + b_mu + sqrt(x^2 @ Var[W].T + b_sigma^2) * eps.

    Weight streams (weight_mu, weight_rho, lambdal) are passed through in their
    stored dtype (bf16 recommended) -- no wrapper-side cast copies.
    """
    B, In = x.shape
    Out = weight_mu.shape[0]

    # Pad only to 128 (lane) / 8 (sublane); tiles are divisors of the padded dims,
    # so there is no dead DMA beyond the unavoidable 128-alignment.
    in_p = _round_up(In, 128)
    out_p = _round_up(Out, 128)
    b_p = _round_up(B, 8)

    ti = _pick_tile(in_p, ti_cap)
    to = _pick_tile(out_p, to_cap)
    # Keep >=2 tiles on the "parallel" Out axis when possible so the grid can
    # shard across v7x's two TensorCores.
    if out_p // to == 1 and out_p >= 256:
        to = _pick_tile(out_p, out_p // 2)

    def pad2(a, r, c):
        if a.shape == (r, c):
            return a                                  # already aligned: no copy
        return jnp.pad(a, ((0, r - a.shape[0]), (0, c - a.shape[1])))

    x_p = pad2(x.astype(jnp.float32), b_p, in_p)
    zk_p = pad2(z_k.reshape(1, In).astype(jnp.float32), 1, in_p)
    wmu_p = pad2(weight_mu, out_p, in_p)              # stored dtype (bf16) untouched
    wrho_p = pad2(weight_rho, out_p, in_p)
    lam_p = pad2(lambdal, out_p, in_p)
    bmu_p = pad2(bias_mu.reshape(1, Out).astype(jnp.float32), 1, out_p)
    bsig2_p = pad2((bias_sigma.astype(jnp.float32) ** 2).reshape(1, Out), 1, out_p)
    eps_p = pad2(eps.astype(jnp.float32), b_p, out_p)

    n_o = out_p // to
    n_i = in_p // ti

    w_bytes = (wmu_p.dtype.itemsize + wrho_p.dtype.itemsize + lam_p.dtype.itemsize)
    cost = pl.CostEstimate(
        flops=6 * b_p * out_p * in_p,
        transcendentals=3 * out_p * in_p,
        bytes_accessed=(out_p * in_p * w_bytes          # three weight streams
                        + n_o * b_p * in_p * 4           # x re-read per Out tile
                        + 2 * b_p * out_p * 4),          # eps in + activations out
    )

    grid_spec = pltpu.PrefetchScalarGridSpec(
        num_scalar_prefetch=0,
        grid=(n_o, n_i),
        in_specs=[
            pl.BlockSpec((b_p, ti), lambda o, k: (0, k)),   # x
            pl.BlockSpec((1, ti), lambda o, k: (0, k)),     # z_k
            pl.BlockSpec((to, ti), lambda o, k: (o, k)),    # weight_mu
            pl.BlockSpec((to, ti), lambda o, k: (o, k)),    # weight_rho
            pl.BlockSpec((to, ti), lambda o, k: (o, k)),    # lambdal
            pl.BlockSpec((1, to), lambda o, k: (0, o)),     # bias_mu
            pl.BlockSpec((1, to), lambda o, k: (0, o)),     # bias_sigma ** 2
            pl.BlockSpec((b_p, to), lambda o, k: (0, o)),   # eps
        ],
        out_specs=pl.BlockSpec((b_p, to), lambda o, k: (0, o)),
        scratch_shapes=[pltpu.VMEM((b_p, to), jnp.float32),   # E[b] accumulator
                        pltpu.VMEM((b_p, to), jnp.float32)],  # Var[b] accumulator
    )

    out = pl.pallas_call(
        _bayes_linear_kernel,
        out_shape=jax.ShapeDtypeStruct((b_p, out_p), jnp.float32),
        grid_spec=grid_spec,
        compiler_params=pltpu.CompilerParams(
            dimension_semantics=("parallel", "arbitrary"),
            vmem_limit_bytes=vmem_limit_bytes,
        ),
        cost_estimate=cost,
    )(x_p, zk_p, wmu_p, wrho_p, lam_p, bmu_p, bsig2_p, eps_p)

    return out[:B, :Out]


# ------------------------------------------------------------------ flow (plain JAX glue)
# TODO(synk): PropagateFlow class source is not in the reference file; a standard masked
# affine IAF with small deterministic synthetic parameters is used instead.
def init_flow_params(key, dim, num_transforms, scale=0.01):
    params = []
    for _ in range(num_transforms):
        key, k1, k2, k3, k4 = jax.random.split(key, 5)
        params.append((scale * jax.random.normal(k1, (dim, dim)),
                       scale * jax.random.normal(k2, (dim,)),
                       scale * jax.random.normal(k3, (dim, dim)),
                       scale * jax.random.normal(k4, (dim,))))
    mask = jnp.tril(jnp.ones((dim, dim), jnp.float32), k=-1)  # strictly autoregressive
    return params, mask


def propagate_flow(z, params, mask):
    log_det = jnp.float32(0.0)
    for Wm, bm, Ws, bs in params:
        m = z @ (Wm * mask) + bm
        s = z @ (Ws * mask) + bs
        gate = jax.nn.sigmoid(s)
        z = gate * z + (1.0 - gate) * m
        log_det = log_det + jnp.sum(jax.nn.log_sigmoid(s))
    return z, log_det


# ------------------------------------------------------------------------------- forward
def bayesian_linear_forward(x, p, rng):
    In = p["q0_mean"].shape[0]
    Out = p["bias_mu"].shape[0]
    k1, k2, k3, k4 = jax.random.split(rng, 4)

    # f32 views of the bf16-stored weight streams for the (cheap) KL side path.
    wmu = p["weight_mu"].astype(jnp.float32)
    wrho = p["weight_rho"].astype(jnp.float32)
    lam = p["lambdal"].astype(jnp.float32)

    alpha_q = jax.nn.sigmoid(lam)
    weight_sigma = jax.nn.softplus(wrho)              # stable softplus
    bias_sigma = jax.nn.softplus(p["bias_rho"])
    q0_std = jnp.sqrt(jnp.exp(p["q0_log_var"]))

    # sample_z() -> z_k (first draw)
    z_pre1 = p["q0_mean"] + q0_std * jax.random.normal(k1, (In,))
    z_k, _ = propagate_flow(z_pre1, p["z_flow"], p["mask"])

    # ----- hot path: fused Pallas kernel ------------------------------------
    eps_act = jax.random.normal(k2, (x.shape[0], Out), dtype=jnp.float32)
    activations = pallas_bayes_linear(x, p["weight_mu"], p["weight_rho"],
                                      p["lambdal"], z_k, p["bias_mu"],
                                      bias_sigma, eps_act)

    # ----- KL side-state (matches reference, stored in self.kl) -------------
    z_pre2 = p["q0_mean"] + q0_std * jax.random.normal(k3, (In,))
    z2, log_det_q = propagate_flow(z_pre2, p["z_flow"], p["mask"])

    W_mean = z2 * wmu * alpha_q
    W_var = alpha_q * (weight_sigma ** 2 + (1 - alpha_q) * (wmu * z2) ** 2)
    log_q0 = jnp.sum(-0.5 * jnp.log(jnp.float32(math.pi)) - 0.5 * p["q0_log_var"]
                     - 0.5 * ((z_pre2 - p["q0_mean"]) ** 2 / jnp.exp(p["q0_log_var"])))
    log_q = -log_det_q + log_q0

    act_mu = p["r0_c"] @ W_mean.T
    act_var = (p["r0_c"] ** 2) @ W_var.T
    k4a, _ = jax.random.split(k4)
    act_inner = act_mu + jnp.sqrt(act_var) * jax.random.normal(k4a, act_var.shape)
    act = jnp.clip(act_inner, -1.0, 1.0)                      # Hardtanh
    mean_r = jnp.mean(jnp.outer(p["r0_b1"], act), axis=-1)
    log_var_r = jnp.mean(jnp.outer(p["r0_b2"], act), axis=-1)
    z_b, log_det_r = propagate_flow(z2, p["r_flow"], p["mask"])
    # NB: reference literally indexes z_b[-1] on a 1-D tensor (last scalar element).
    log_rb = jnp.sum(-0.5 * jnp.log(jnp.float32(math.pi)) - 0.5 * log_var_r
                     - 0.5 * ((z_b[-1] - mean_r) ** 2 / jnp.exp(log_var_r)))
    log_r = log_det_r + log_rb

    bias_sigma_prior = jnp.ones((Out,), jnp.float32)
    bias_mu_prior = jnp.zeros((Out,), jnp.float32)
    sigma_prior = jnp.ones((Out, In), jnp.float32)
    mu_prior = jnp.zeros((Out, In), jnp.float32)
    alpha_prior = jnp.full((Out, In), 0.25, jnp.float32)

    kl_bias = jnp.sum(jnp.log(bias_sigma_prior / bias_sigma) - 0.5
                      + (bias_sigma ** 2 + (p["bias_mu"] - bias_mu_prior) ** 2)
                      / (2 * bias_sigma_prior ** 2))
    kl_weight = jnp.sum(
        alpha_q * (jnp.log(sigma_prior / weight_sigma) - 0.5
                   + jnp.log(alpha_q / alpha_prior)
                   + (weight_sigma ** 2 + (wmu * z2 - mu_prior) ** 2)
                   / (2 * sigma_prior ** 2))
        + (1 - alpha_q) * jnp.log((1 - alpha_q) / (1 - alpha_prior)))
    kl = kl_bias + kl_weight + log_q - log_r
    return activations, kl


# ---------------------------------------------------------------------------- param init
def init_params(key, in_features, out_features, num_transforms):
    ks = jax.random.split(key, 12)
    p = {
        # The three big (Out, In) streams are stored in bf16: halves the HBM traffic
        # of the bandwidth-bound kernel; the in-kernel .astype(f32) upcasts per tile.
        "weight_mu": jax.random.uniform(ks[0], (out_features, in_features),
                                        minval=-0.01, maxval=0.01).astype(jnp.bfloat16),
        "weight_rho": jax.random.uniform(ks[1], (out_features, in_features),
                                         minval=-5.0, maxval=-4.0).astype(jnp.bfloat16),
        "lambdal": jax.random.uniform(ks[2], (out_features, in_features),
                                      minval=1.5, maxval=2.5).astype(jnp.bfloat16),
        "bias_mu": jax.random.uniform(ks[3], (out_features,), minval=-0.01, maxval=0.01),
        "bias_rho": jax.random.uniform(ks[4], (out_features,), minval=-5.0, maxval=-4.0),
        "q0_mean": 0.001 * jax.random.normal(ks[5], (in_features,)),
        "q0_log_var": -9.0 + 0.001 * jax.random.normal(ks[6], (in_features,)),
        "r0_c": 0.001 * jax.random.normal(ks[7], (in_features,)),
        "r0_b1": 0.001 * jax.random.normal(ks[8], (in_features,)),
        "r0_b2": 0.001 * jax.random.normal(ks[9], (in_features,)),
    }
    p["z_flow"], p["mask"] = init_flow_params(ks[10], in_features, num_transforms)
    p["r_flow"], _ = init_flow_params(ks[11], in_features, num_transforms)

    def _cast(a):
        return a if a.dtype == jnp.bfloat16 else a.astype(jnp.float32)
    return jax.tree_util.tree_map(_cast, p)


# ---------------------------------------------------------------------------- reference
def _ref_bayes_linear(x, weight_mu, weight_rho, lambdal, z_k, bias_mu, bias_sigma, eps):
    wmu = weight_mu.astype(jnp.float32)
    alpha = jax.nn.sigmoid(lambdal.astype(jnp.float32))
    wsig = jax.nn.softplus(weight_rho.astype(jnp.float32))
    e_w = wmu * alpha * z_k
    var_w = alpha * (wsig ** 2 + (1.0 - alpha) * (wmu * z_k) ** 2)
    e_b = x @ e_w.T + bias_mu
    var_b = (x ** 2) @ var_w.T + bias_sigma ** 2
    return e_b + jnp.sqrt(var_b) * eps


if __name__ == "__main__":
    in_features, out_features, num_transforms = 32, 16, 2
    batch = 8

    key = jax.random.PRNGKey(0)
    pkey, xkey, fkey, zkey, ekey = jax.random.split(key, 5)
    params = init_params(pkey, in_features, out_features, num_transforms)
    x = jax.random.normal(xkey, (batch, in_features), dtype=jnp.float32)

    # Full module forward (flow + fused Pallas hot path + KL).
    activations, kl = bayesian_linear_forward(x, params, fkey)
    jax.block_until_ready((activations, kl))

    assert activations.shape == (batch, out_features)
    assert activations.dtype == jnp.float32
    assert jnp.isfinite(activations).all() and jnp.isfinite(kl)

    # Direct kernel-vs-reference check with deterministic z_k / eps (same bf16-stored
    # weights feed both paths; kernel sigmoid/softplus are exact, so tolerance is tight).
    z_k = 1.0 + 0.01 * jax.random.normal(zkey, (in_features,), dtype=jnp.float32)
    eps = jax.random.normal(ekey, (batch, out_features), dtype=jnp.float32)
    bias_sigma = jax.nn.softplus(params["bias_rho"])
    got = pallas_bayes_linear(x, params["weight_mu"], params["weight_rho"],
                              params["lambdal"], z_k, params["bias_mu"],
                              bias_sigma, eps)
    want = _ref_bayes_linear(x, params["weight_mu"], params["weight_rho"],
                             params["lambdal"], z_k, params["bias_mu"],
                             bias_sigma, eps)
    jax.block_until_ready((got, want))
    assert jnp.allclose(got, want, rtol=1e-4, atol=1e-5), float(jnp.max(jnp.abs(got - want)))

    print("KERNEL_OK")
</pallas_src>

<mosaic_0001>
module attributes {stable_mosaic.version = 11 : i64} {
  func.func @_bayes_linear_kernel(%arg0: i32, %arg1: i32, %arg2: memref<8x128xf32, #tpu.memory_space<vmem>>, %arg3: memref<1x128xf32, #tpu.memory_space<vmem>>, %arg4: memref<128x128xbf16, #tpu.memory_space<vmem>>, %arg5: memref<128x128xbf16, #tpu.memory_space<vmem>>, %arg6: memref<128x128xbf16, #tpu.memory_space<vmem>>, %arg7: memref<1x128xf32, #tpu.memory_space<vmem>>, %arg8: memref<1x128xf32, #tpu.memory_space<vmem>>, %arg9: memref<8x128xf32, #tpu.memory_space<vmem>>, %arg10: memref<8x128xf32, #tpu.memory_space<vmem>>, %arg11: memref<8x128xf32, #tpu.memory_space<vmem>>, %arg12: memref<8x128xf32, #tpu.memory_space<vmem>>) attributes {dimension_semantics = [#tpu.dimension_semantics<parallel>, #tpu.dimension_semantics<arbitrary>], iteration_bounds = array<i64: 1, 1>, scalar_prefetch = 0 : i64, scratch_operands = 2 : i64, tpu.core_type = #tpu.core_type<tc>, window_params = [{transform_indices = @transform_0, window_bounds = array<i64: 8, 128>}, {transform_indices = @transform_1, window_bounds = array<i64: 1, 128>}, {transform_indices = @transform_2, window_bounds = array<i64: 128, 128>}, {transform_indices = @transform_3, window_bounds = array<i64: 128, 128>}, {transform_indices = @transform_4, window_bounds = array<i64: 128, 128>}, {transform_indices = @transform_5, window_bounds = array<i64: 1, 128>}, {transform_indices = @transform_6, window_bounds = array<i64: 1, 128>}, {transform_indices = @transform_7, window_bounds = array<i64: 8, 128>}, {transform_indices = @transform_8, window_bounds = array<i64: 8, 128>}]} {
    %c0_i32 = arith.constant 0 : i32
    %0 = arith.cmpi eq, %arg1, %c0_i32 : i32
    %1 = arith.extui %0 : i1 to i32
    %c0_i32_0 = arith.constant 0 : i32
    %2 = arith.cmpi ne, %1, %c0_i32_0 : i32
    scf.if %2 {
      %cst_28 = arith.constant 0.000000e+00 : f32
      %51 = vector.broadcast %cst_28 : f32 to vector<8x128xf32>
      %c0_29 = arith.constant 0 : index
      %c0_30 = arith.constant 0 : index
      %52 = vector.load %arg11[%c0_29, %c0_30] : memref<8x128xf32, #tpu.memory_space<vmem>>, vector<8x128xf32>
      tpu.vector_store %arg11[%c0_29, %c0_30], %51 {strides = array<i32>} : memref<8x128xf32, #tpu.memory_space<vmem>>, vector<8x128xf32>,
      %cst_31 = arith.constant 0.000000e+00 : f32
      %53 = vector.broadcast %cst_31 : f32 to vector<8x128xf32>
      %c0_32 = arith.constant 0 : index
      %c0_33 = arith.constant 0 : index
      %54 = vector.load %arg12[%c0_32, %c0_33] : memref<8x128xf32, #tpu.memory_space<vmem>>, vector<8x128xf32>
      tpu.vector_store %arg12[%c0_32, %c0_33], %53 {strides = array<i32>} : memref<8x128xf32, #tpu.memory_space<vmem>>, vector<8x128xf32>,
    } else {
    }
    %c0 = arith.constant 0 : index
    %c0_1 = arith.constant 0 : index
    %3 = vector.load %arg2[%c0, %c0_1] : memref<8x128xf32, #tpu.memory_space<vmem>>, vector<8x128xf32>
    %c0_2 = arith.constant 0 : index
    %c0_3 = arith.constant 0 : index
    %4 = vector.load %arg3[%c0_2, %c0_3] : memref<1x128xf32, #tpu.memory_space<vmem>>, vector<1x128xf32>
    %5 = vector.broadcast %4 : vector<1x128xf32> to vector<8x128xf32>
    %6 = arith.mulf %3, %5 : vector<8x128xf32>
    %7 = arith.mulf %3, %3 : vector<8x128xf32>
    %c0_4 = arith.constant 0 : index
    %c0_5 = arith.constant 0 : index
    %8 = vector.load %arg6[%c0_4, %c0_5] : memref<128x128xbf16, #tpu.memory_space<vmem>>, vector<128x128xbf16>
    %9 = arith.extf %8 : vector<128x128xbf16> to vector<128x128xf32>
    %cst = arith.constant 5.000000e-01 : f32
    %10 = vector.broadcast %cst : f32 to vector<128x128xf32>
    %11 = arith.mulf %10, %9 : vector<128x128xf32>
    %12 = math.tanh %11 : vector<128x128xf32>
    %cst_6 = arith.constant 5.000000e-01 : f32
    %13 = vector.broadcast %cst_6 : f32 to vector<128x128xf32>
    %14 = arith.mulf %13, %12 : vector<128x128xf32>
    %cst_7 = arith.constant 5.000000e-01 : f32
    %15 = vector.broadcast %cst_7 : f32 to vector<128x128xf32>
    %16 = arith.addf %14, %15 : vector<128x128xf32>
    %c0_8 = arith.constant 0 : index
    %c0_9 = arith.constant 0 : index
    %17 = vector.load %arg4[%c0_8, %c0_9] : memref<128x128xbf16, #tpu.memory_space<vmem>>, vector<128x128xbf16>
    %18 = arith.extf %17 : vector<128x128xbf16> to vector<128x128xf32>
    %c0_10 = arith.constant 0 : index
    %c0_11 = arith.constant 0 : index
    %19 = vector.load %arg11[%c0_10, %c0_11] : memref<8x128xf32, #tpu.memory_space<vmem>>, vector<8x128xf32>
    %20 = arith.mulf %18, %16 : vector<128x128xf32>
    %cst_12 = arith.constant dense<0.000000e+00> : vector<8x128xf32>
    %21 = tpu.matmul %6, %20, %cst_12 {dimension_numbers = #tpu.dot_dimension_numbers<[1], [1], [0], [0], [0, 0, 1, 0], [], []>} : vector<8x128xf32>, vector<128x128xf32>, vector<8x128xf32> -> vector<8x128xf32>
    %22 = arith.addf %19, %21 : vector<8x128xf32>
    %c0_13 = arith.constant 0 : index
    %c0_14 = arith.constant 0 : index
    %23 = vector.load %arg11[%c0_13, %c0_14] : memref<8x128xf32, #tpu.memory_space<vmem>>, vector<8x128xf32>
    tpu.vector_store %arg11[%c0_13, %c0_14], %22 {strides = array<i32>} : memref<8x128xf32, #tpu.memory_space<vmem>>, vector<8x128xf32>,
    %c0_15 = arith.constant 0 : index
    %c0_16 = arith.constant 0 : index
    %24 = vector.load %arg5[%c0_15, %c0_16] : memref<128x128xbf16, #tpu.memory_space<vmem>>, vector<128x128xbf16>
    %25 = arith.extf %24 : vector<128x128xbf16> to vector<128x128xf32>
    %cst_17 = arith.constant 0.000000e+00 : f32
    %26 = vector.broadcast %cst_17 : f32 to vector<128x128xf32>
    %27 = arith.maximumf %25, %26 : vector<128x128xf32>
    %28 = math.absf %25 : vector<128x128xf32>
    %cst_18 = arith.constant 0.000000e+00 : f32
    %29 = vector.broadcast %cst_18 : f32 to vector<128x128xf32>
    %30 = arith.subf %29, %28 : vector<128x128xf32>
    %31 = math.exp %30 : vector<128x128xf32>
    %32 = math.log1p %31 : vector<128x128xf32>
    %33 = arith.addf %27, %32 : vector<128x128xf32>
    %34 = arith.mulf %33, %33 : vector<128x128xf32>
    %35 = arith.mulf %16, %34 : vector<128x128xf32>
    %cst_19 = arith.constant dense<0.000000e+00> : vector<8x128xf32>
    %36 = tpu.matmul %7, %35, %cst_19 {dimension_numbers = #tpu.dot_dimension_numbers<[1], [1], [0], [0], [0, 0, 1, 0], [], []>} : vector<8x128xf32>, vector<128x128xf32>, vector<8x128xf32> -> vector<8x128xf32>
    %37 = arith.mulf %6, %6 : vector<8x128xf32>
    %cst_20 = arith.constant 1.000000e+00 : f32
    %38 = vector.broadcast %cst_20 : f32 to vector<128x128xf32>
    %39 = arith.subf %38, %16 : vector<128x128xf32>
    %40 = arith.mulf %16, %39 : vector<128x128xf32>
    %41 = arith.mulf %18, %18 : vector<128x128xf32>
    %42 = arith.mulf %40, %41 : vector<128x128xf32>
    %cst_21 = arith.constant dense<0.000000e+00> : vector<8x128xf32>
    %43 = tpu.matmul %37, %42, %cst_21 {dimension_numbers = #tpu.dot_dimension_numbers<[1], [1], [0], [0], [0, 0, 1, 0], [], []>} : vector<8x128xf32>, vector<128x128xf32>, vector<8x128xf32> -> vector<8x128xf32>
    %44 = arith.addf %36, %43 : vector<8x128xf32>
    %c0_22 = arith.constant 0 : index
    %c0_23 = arith.constant 0 : index
    %45 = vector.load %arg12[%c0_22, %c0_23] : memref<8x128xf32, #tpu.memory_space<vmem>>, vector<8x128xf32>
    %46 = arith.addf %45, %44 : vector<8x128xf32>
    %c0_24 = arith.constant 0 : index
    %c0_25 = arith.constant 0 : index
    %47 = vector.load %arg12[%c0_24, %c0_25] : memref<8x128xf32, #tpu.memory_space<vmem>>, vector<8x128xf32>
    tpu.vector_store %arg12[%c0_24, %c0_25], %46 {strides = array<i32>} : memref<8x128xf32, #tpu.memory_space<vmem>>, vector<8x128xf32>,
    %c0_i32_26 = arith.constant 0 : i32
    %48 = arith.cmpi eq, %arg1, %c0_i32_26 : i32
    %49 = arith.extui %48 : i1 to i32
    %c0_i32_27 = arith.constant 0 : i32
    %50 = arith.cmpi ne, %49, %c0_i32_27 : i32
    scf.if %50 {
      %c0_28 = arith.constant 0 : index
      %c0_29 = arith.constant 0 : index
      %51 = vector.load %arg11[%c0_28, %c0_29] : memref<8x128xf32, #tpu.memory_space<vmem>>, vector<8x128xf32>
      %c0_30 = arith.constant 0 : index
      %c0_31 = arith.constant 0 : index
      %52 = vector.load %arg7[%c0_30, %c0_31] : memref<1x128xf32, #tpu.memory_space<vmem>>, vector<1x128xf32>
      %53 = vector.broadcast %52 : vector<1x128xf32> to vector<8x128xf32>
      %54 = arith.addf %51, %53 : vector<8x128xf32>
      %c0_32 = arith.constant 0 : index
      %c0_33 = arith.constant 0 : index
      %55 = vector.load %arg12[%c0_32, %c0_33] : memref<8x128xf32, #tpu.memory_space<vmem>>, vector<8x128xf32>
      %c0_34 = arith.constant 0 : index
      %c0_35 = arith.constant 0 : index
      %56 = vector.load %arg8[%c0_34, %c0_35] : memref<1x128xf32, #tpu.memory_space<vmem>>, vector<1x128xf32>
      %57 = vector.broadcast %56 : vector<1x128xf32> to vector<8x128xf32>
      %58 = arith.addf %55, %57 : vector<8x128xf32>
      %cst_36 = arith.constant 0.000000e+00 : f32
      %59 = vector.broadcast %cst_36 : f32 to vector<8x128xf32>
      %60 = arith.maximumf %58, %59 : vector<8x128xf32>
      %61 = math.sqrt %60 : vector<8x128xf32>
      %c0_37 = arith.constant 0 : index
      %c0_38 = arith.constant 0 : index
      %62 = vector.load %arg9[%c0_37, %c0_38] : memref<8x128xf32, #tpu.memory_space<vmem>>, vector<8x128xf32>
      %63 = arith.mulf %61, %62 : vector<8x128xf32>
      %64 = arith.addf %54, %63 : vector<8x128xf32>
      %c0_39 = arith.constant 0 : index
      %c0_40 = arith.constant 0 : index
      %65 = vector.load %arg10[%c0_39, %c0_40] : memref<8x128xf32, #tpu.memory_space<vmem>>, vector<8x128xf32>
      tpu.vector_store %arg10[%c0_39, %c0_40], %64 {strides = array<i32>} : memref<8x128xf32, #tpu.memory_space<vmem>>, vector<8x128xf32>,
    } else {
    }
    return
  }
  func.func @transform_0(%arg0: i32, %arg1: i32) -> (i32, i32) {
    %c0_i32 = arith.constant 0 : i32
    %c0_i32_0 = arith.constant 0 : i32
    return %c0_i32, %arg1 : i32, i32
  }
  func.func @transform_1(%arg0: i32, %arg1: i32) -> (i32, i32) {
    %c0_i32 = arith.constant 0 : i32
    %c0_i32_0 = arith.constant 0 : i32
    return %c0_i32, %arg1 : i32, i32
  }
  func.func @transform_2(%arg0: i32, %arg1: i32) -> (i32, i32) {
    %c0_i32 = arith.constant 0 : i32
    return %arg0, %arg1 : i32, i32
  }
  func.func @transform_3(%arg0: i32, %arg1: i32) -> (i32, i32) {
    %c0_i32 = arith.constant 0 : i32
    return %arg0, %arg1 : i32, i32
  }
  func.func @transform_4(%arg0: i32, %arg1: i32) -> (i32, i32) {
    %c0_i32 = arith.constant 0 : i32
    return %arg0, %arg1 : i32, i32
  }
  func.func @transform_5(%arg0: i32, %arg1: i32) -> (i32, i32) {
    %c0_i32 = arith.constant 0 : i32
    %c0_i32_0 = arith.constant 0 : i32
    return %c0_i32, %arg0 : i32, i32
  }
  func.func @transform_6(%arg0: i32, %arg1: i32) -> (i32, i32) {
    %c0_i32 = arith.constant 0 : i32
    %c0_i32_0 = arith.constant 0 : i32
    return %c0_i32, %arg0 : i32, i32
  }
  func.func @transform_7(%arg0: i32, %arg1: i32) -> (i32, i32) {
    %c0_i32 = arith.constant 0 : i32
    %c0_i32_0 = arith.constant 0 : i32
    return %c0_i32, %arg0 : i32, i32
  }
  func.func @transform_8(%arg0: i32, %arg1: i32) -> (i32, i32) {
    %c0_i32 = arith.constant 0 : i32
    %c0_i32_0 = arith.constant 0 : i32
    return %c0_i32, %arg0 : i32, i32
  }
}

</mosaic_0001>

<llo_original>
// kernel: tpu_custom_call.1
$region0: #{tpu_custom_call.1}
  #allocation0 [shape = 'u32[]', space=smem, size = 0x4, offset = 0x4, fixed_abs, tag = 'smem constant byte address 0x4 - core index']
  #allocation1 [shape = 'u32[72,128]{1,0:T(1,128)}', space=vmem, size = 0x9000, scoped, tag = 'internal scratch']
  #allocation2 [shape = 'f32[8,128]{1,0:T(8,128)}', space=vmem, size = 0x1000, scoped, tag = 'scratch operand']
  #allocation3 [shape = 'f32[8,128]{1,0:T(8,128)}', space=vmem, size = 0x1000, scoped, tag = 'scratch operand']
  %s0 = inlined_call_operand.hbm [shape: f32[8,128], index: 0, kind: input, shape index: {}]
  %s1 = inlined_call_operand.hbm [shape: f32[1,128], index: 1, kind: input, shape index: {}]
  %s2 = inlined_call_operand.hbm [shape: bf16[128,128], index: 2, kind: input, shape index: {}]
  %s3 = inlined_call_operand.hbm [shape: bf16[128,128], index: 3, kind: input, shape index: {}]
  %s4 = inlined_call_operand.hbm [shape: bf16[128,128], index: 4, kind: input, shape index: {}]
  %s5 = inlined_call_operand.vmem [shape: f32[1,128], index: 5, kind: input, shape index: {}]
  %s6 = inlined_call_operand.vmem [shape: f32[1,128], index: 6, kind: input, shape index: {}]
  %s7 = inlined_call_operand.hbm [shape: f32[8,128], index: 7, kind: input, shape index: {}]
  %s8 = inlined_call_operand.hbm [shape: f32[8,128], index: 8, kind: output, shape index: {}]
  %s9 = sld [smem:[#allocation0]]
  $region74: #{tpu_custom_call.1} parent=0
    _
  %s11 = ssub.s32 1, %s9
  %s12 = scalar_select 0, %s11, %s9
  $region1: #{tpu_custom_call.1} parent=0
    #allocation4 [shape = 'u8[4096]{0}', space=vmem, size = 0x1000, scoped, tag = 'input window, operand 0, single buffered']
    #allocation5 [shape = 's32[1]{0}', space=sflag, size = 0x4, scoped, tag = 'scoped memory for tpu_custom_call.1']
    #allocation6 [shape = 's32[1]{0}', space=sflag, size = 0x4, scoped, tag = 'scoped memory for tpu_custom_call.1']
    #allocation7 [shape = 'u8[512]{0}', space=vmem, size = 0x400, scoped, tag = 'input window, operand 1, single buffered']
    #allocation8 [shape = 's32[1]{0}', space=sflag, size = 0x4, scoped, tag = 'scoped memory for tpu_custom_call.1']
    #allocation9 [shape = 'u8[32768]{0}', space=vmem, size = 0x8000, scoped, tag = 'input window, operand 2, single buffered']
    #allocation10 [shape = 'u8[32768]{0}', space=vmem, size = 0x8000, scoped, tag = 'input window, operand 3, single buffered']
    #allocation11 [shape = 's32[1]{0}', space=sflag, size = 0x4, scoped, tag = 'scoped memory for tpu_custom_call.1']
    #allocation12 [shape = 'u8[32768]{0}', space=vmem, size = 0x8000, scoped, tag = 'input window, operand 4, single buffered']
    #allocation13 [shape = 'u8[4096]{0}', space=vmem, size = 0x1000, scoped, tag = 'input window, operand 7, single buffered']
    #allocation14 [shape = 's32[1]{0}', space=sflag, size = 0x4, scoped, tag = 'scoped memory for tpu_custom_call.1']
    #allocation15 [shape = 'u8[4096]{0}', space=vmem, size = 0x1000, scoped, tag = 'output window, operand 0, single buffered']
    %13 = vsyncpa [#allocation5], 0
    %14 = vsyncpa [#allocation8], 0
    %15 = vsyncpa [#allocation11], 0
    %16 = vsyncpa [#allocation14], 0
    %17 = vsyncpa [#allocation6], 0
    // Predicated region
    $region2: #{tpu_custom_call.1} parent=1 // pred_check
      _
    $region3: #{tpu_custom_call.1} parent=1 // pred_check_branch
      %19 = sbr.rel (0) target = $region5
    $region4: #{tpu_custom_call.1} parent=1 // pred_region
      %21 = vsyncadd [#allocation5], 0
      %s23 = sshll.u32 %s0, 4
      %s24 = int_to_ptr.hbm [resolvable:$true] %s23
      %s25 = sshll.u32 [#allocation4], 4
      %s26 = int_to_ptr.vmem [resolvable:$true] %s25
      %28 = dma.hbm_to_vmem [thread:$0]  %s24, 128, %s26, [#allocation5]
    $region5: #{tpu_custom_call.1} parent=1 // pred_fallthru
      _
    // Predicated region
    $region6: #{tpu_custom_call.1} parent=1 // pred_check
      _
    $region7: #{tpu_custom_call.1} parent=1 // pred_check_branch
      %30 = sbr.rel (0) target = $region9
    $region8: #{tpu_custom_call.1} parent=1 // pred_region
      %32 = vsyncadd [#allocation8], 0
      %s34 = sshll.u32 %s1, 4
      %s35 = int_to_ptr.hbm [resolvable:$true] %s34
      %s36 = sshll.u32 [#allocation7], 4
      %s37 = int_to_ptr.vmem [resolvable:$true] %s36
      %39 = dma.hbm_to_vmem [thread:$0]  %s35, 16, %s37, [#allocation8]
    $region9: #{tpu_custom_call.1} parent=1 // pred_fallthru
      _
    // Predicated region
    $region10: #{tpu_custom_call.1} parent=1 // pred_check
      _
    $region11: #{tpu_custom_call.1} parent=1 // pred_check_branch
      %41 = sbr.rel (0) target = $region13
    $region12: #{tpu_custom_call.1} parent=1 // pred_region
      %43 = vsyncadd [#allocation8], 0
      %s44 = sshll.u32 %s2, 4
      %s45 = int_to_ptr.hbm [resolvable:$true] %s44
      %s46 = sshll.u32 [#allocation9], 4
      %s47 = int_to_ptr.vmem [resolvable:$true] %s46
      %52 = dma.hbm_to_vmem [thread:$0]  %s45, 1024, %s47, [#allocation8], 64, 64, 4
    $region13: #{tpu_custom_call.1} parent=1 // pred_fallthru
      _
    // Predicated region
    $region14: #{tpu_custom_call.1} parent=1 // pred_check
      _
    $region15: #{tpu_custom_call.1} parent=1 // pred_check_branch
      %54 = sbr.rel (0) target = $region17
    $region16: #{tpu_custom_call.1} parent=1 // pred_region
      %56 = vsyncadd [#allocation11], 0
      %s57 = sshll.u32 %s3, 4
      %s58 = int_to_ptr.hbm [resolvable:$true] %s57
      %s59 = sshll.u32 [#allocation10], 4
      %s60 = int_to_ptr.vmem [resolvable:$true] %s59
      %65 = dma.hbm_to_vmem [thread:$0]  %s58, 1024, %s60, [#allocation11], 64, 64, 4
    $region17: #{tpu_custom_call.1} parent=1 // pred_fallthru
      _
    // Predicated region
    $region18: #{tpu_custom_call.1} parent=1 // pred_check
      _
    $region19: #{tpu_custom_call.1} parent=1 // pred_check_branch
      %67 = sbr.rel (0) target = $region21
    $region20: #{tpu_custom_call.1} parent=1 // pred_region
      %69 = vsyncadd [#allocation11], 0
      %s70 = sshll.u32 %s4, 4
      %s71 = int_to_ptr.hbm [resolvable:$true] %s70
      %s72 = sshll.u32 [#allocation12], 4
      %s73 = int_to_ptr.vmem [resolvable:$true] %s72
      %78 = dma.hbm_to_vmem [thread:$0]  %s71, 1024, %s73, [#allocation11], 64, 64, 4
    $region21: #{tpu_custom_call.1} parent=1 // pred_fallthru
      _
    // Predicated region
    $region22: #{tpu_custom_call.1} parent=1 // pred_check
      _
    $region23: #{tpu_custom_call.1} parent=1 // pred_check_branch
      %80 = sbr.rel (0) target = $region25
    $region24: #{tpu_custom_call.1} parent=1 // pred_region
      _
    $region25: #{tpu_custom_call.1} parent=1 // pred_fallthru
      _
    // Predicated region
    $region26: #{tpu_custom_call.1} parent=1 // pred_check
      _
    $region27: #{tpu_custom_call.1} parent=1 // pred_check_branch
      %82 = sbr.rel (0) target = $region29
    $region28: #{tpu_custom_call.1} parent=1 // pred_region
      _
    $region29: #{tpu_custom_call.1} parent=1 // pred_fallthru
      _
    // Predicated region
    $region30: #{tpu_custom_call.1} parent=1 // pred_check
      _
    $region31: #{tpu_custom_call.1} parent=1 // pred_check_branch
      %84 = sbr.rel (0) target = $region33
    $region32: #{tpu_custom_call.1} parent=1 // pred_region
      %86 = vsyncadd [#allocation14], 0
      %s88 = sshll.u32 %s7, 4
      %s89 = int_to_ptr.hbm [resolvable:$true] %s88
      %s90 = sshll.u32 [#allocation13], 4
      %s91 = int_to_ptr.vmem [resolvable:$true] %s90
      %93 = dma.hbm_to_vmem [thread:$0]  %s89, 128, %s91, [#allocation14]
    $region33: #{tpu_custom_call.1} parent=1 // pred_fallthru
      _
    // Predicated region
    $region34: #{tpu_custom_call.1} parent=1 // pred_check
      _
    $region35: #{tpu_custom_call.1} parent=1 // pred_check_branch
      %95 = sbr.rel (0) target = $region37
    $region36: #{tpu_custom_call.1} parent=1 // pred_region
      %97 = dma.done [#allocation5], 128
    $region37: #{tpu_custom_call.1} parent=1 // pred_fallthru
      _
    // Predicated region
    $region38: #{tpu_custom_call.1} parent=1 // pred_check
      _
    $region39: #{tpu_custom_call.1} parent=1 // pred_check_branch
      %99 = sbr.rel (0) target = $region41
    $region40: #{tpu_custom_call.1} parent=1 // pred_region
      %101 = dma.done [#allocation8], 16
    $region41: #{tpu_custom_call.1} parent=1 // pred_fallthru
      _
    // Predicated region
    $region42: #{tpu_custom_call.1} parent=1 // pred_check
      _
    $region43: #{tpu_custom_call.1} parent=1 // pred_check_branch
      %103 = sbr.rel (0) target = $region45
    $region44: #{tpu_custom_call.1} parent=1 // pred_region
      %105 = dma.done [#allocation8], 1024
    $region45: #{tpu_custom_call.1} parent=1 // pred_fallthru
      _
    // Predicated region
    $region46: #{tpu_custom_call.1} parent=1 // pred_check
      _
    $region47: #{tpu_custom_call.1} parent=1 // pred_check_branch
      %107 = sbr.rel (0) target = $region49
    $region48: #{tpu_custom_call.1} parent=1 // pred_region
      %109 = dma.done [#allocation11], 1024
    $region49: #{tpu_custom_call.1} parent=1 // pred_fallthru
      _
    // Predicated region
    $region50: #{tpu_custom_call.1} parent=1 // pred_check
      _
    $region51: #{tpu_custom_call.1} parent=1 // pred_check_branch
      %111 = sbr.rel (0) target = $region53
    $region52: #{tpu_custom_call.1} parent=1 // pred_region
      %113 = dma.done [#allocation11], 1024
    $region53: #{tpu_custom_call.1} parent=1 // pred_fallthru
      _
    // Predicated region
    $region54: #{tpu_custom_call.1} parent=1 // pred_check
      _
    $region55: #{tpu_custom_call.1} parent=1 // pred_check_branch
      %115 = sbr.rel (0) target = $region57
    $region56: #{tpu_custom_call.1} parent=1 // pred_region
      %117 = dma.done [#allocation14], 128
    $region57: #{tpu_custom_call.1} parent=1 // pred_fallthru
      _
    %p118 = scmp.eq.s32.totalorder 0, 0
    // Predicated region
    $region58: #{tpu_custom_call.1} parent=1 // pred_check
      %p119 = pneg %p118
    $region59: #{tpu_custom_call.1} parent=1 // pred_check_branch
      %121 = sbr.rel (%p119) target = $region61
    $region60: #{tpu_custom_call.1} parent=1 // pred_region
      %122 = vst [vmem:[#allocation2] sm:$0xff] 0.0
      %123 = vst [vmem:[#allocation3] sm:$0xff] 0.0
    $region61: #{tpu_custom_call.1} parent=1 // pred_fallthru
      _
    %v124 = vld [vmem:[#allocation4] sm:$0xff]
    %v125 = vld [vmem:[#allocation7] sm:$0x1]
    %v127 = vperm.slane %v125, 0
    %v129 = vmul.f32 %v124, %v127
    %v130 = vmul.f32 %v124, %v124
    %v131 = vld [vmem:[#allocation12] sm:$0xf]
    %v132 = vld [vmem:[#allocation12 + $0x4] sm:$0xf]
    %v133 = vld [vmem:[#allocation12 + $0x8] sm:$0xf]
    %v134 = vld [vmem:[#allocation12 + $0xc] sm:$0xf]
    %v135 = vld [vmem:[#allocation12 + $0x10] sm:$0xf]
    %v136 = vld [vmem:[#allocation12 + $0x14] sm:$0xf]
    %v137 = vld [vmem:[#allocation12 + $0x18] sm:$0xf]
    %v138 = vld [vmem:[#allocation12 + $0x1c] sm:$0xf]
    %v139 = vld [vmem:[#allocation12 + $0x20] sm:$0xf]
    %v140 = vld [vmem:[#allocation12 + $0x24] sm:$0xf]
    %v141 = vld [vmem:[#allocation12 + $0x28] sm:$0xf]
    %v142 = vld [vmem:[#allocation12 + $0x2c] sm:$0xf]
    %v143 = vld [vmem:[#allocation12 + $0x30] sm:$0xf]
    %v144 = vld [vmem:[#allocation12 + $0x34] sm:$0xf]
    %v145 = vld [vmem:[#allocation12 + $0x38] sm:$0xf]
    %v146 = vld [vmem:[#allocation12 + $0x3c] sm:$0xf]
    %v147 = vunpack.c.l.bf16 %v131
    %v148 = vunpack.c.l.bf16 %v132
    %v149 = vunpack.c.l.bf16 %v133
    %v150 = vunpack.c.l.bf16 %v134
    %v151 = vunpack.c.l.bf16 %v135
    %v152 = vunpack.c.l.bf16 %v136
    %v153 = vunpack.c.l.bf16 %v137
    %v154 = vunpack.c.l.bf16 %v138
    %v155 = vunpack.c.l.bf16 %v139
    %v156 = vunpack.c.l.bf16 %v140
    %v157 = vunpack.c.l.bf16 %v141
    %v158 = vunpack.c.l.bf16 %v142
    %v159 = vunpack.c.l.bf16 %v143
    %v160 = vunpack.c.l.bf16 %v144
    %v161 = vunpack.c.l.bf16 %v145
    %v162 = vunpack.c.l.bf16 %v146
    %v163 = vmul.f32 %v147, 0.5
    %v164 = vmul.f32 %v148, 0.5
    %v165 = vmul.f32 %v149, 0.5
    %v166 = vmul.f32 %v150, 0.5
    %v167 = vmul.f32 %v151, 0.5
    %v168 = vmul.f32 %v152, 0.5
    %v169 = vmul.f32 %v153, 0.5
    %v170 = vmul.f32 %v154, 0.5
    %v171 = vmul.f32 %v155, 0.5
    %v172 = vmul.f32 %v156, 0.5
    %v173 = vmul.f32 %v157, 0.5
    %v174 = vmul.f32 %v158, 0.5
    %v175 = vmul.f32 %v159, 0.5
    %v176 = vmul.f32 %v160, 0.5
    %v177 = vmul.f32 %v161, 0.5
    %v178 = vmul.f32 %v162, 0.5
    %v179 = vtanh.pop %v163
    %v180 = vtanh.pop %v164
    %v181 = vtanh.pop %v165
    %v182 = vtanh.pop %v166
    %v183 = vtanh.pop %v167
    %v184 = vtanh.pop %v168
    %v185 = vtanh.pop %v169
    %v186 = vtanh.pop %v170
    %v187 = vtanh.pop %v171
    %v188 = vtanh.pop %v172
    %v189 = vtanh.pop %v173
    %v190 = vtanh.pop %v174
    %v191 = vtanh.pop %v175
    %v192 = vtanh.pop %v176
    %v193 = vtanh.pop %v177
    %v194 = vtanh.pop %v178
    %v195 = vmul.f32 %v179, 0.5
    %v196 = vmul.f32 %v180, 0.5
    %v197 = vmul.f32 %v181, 0.5
    %v198 = vmul.f32 %v182, 0.5
    %v199 = vmul.f32 %v183, 0.5
    %v200 = vmul.f32 %v184, 0.5
    %v201 = vmul.f32 %v185, 0.5
    %v202 = vmul.f32 %v186, 0.5
    %v203 = vmul.f32 %v187, 0.5
    %v204 = vmul.f32 %v188, 0.5
    %v205 = vmul.f32 %v189, 0.5
    %v206 = vmul.f32 %v190, 0.5
    %v207 = vmul.f32 %v191, 0.5
    %v208 = vmul.f32 %v192, 0.5
    %v209 = vmul.f32 %v193, 0.5
    %v210 = vmul.f32 %v194, 0.5
    %v211 = vadd.f32 %v195, 0.5
    %v212 = vadd.f32 %v196, 0.5
    %v213 = vadd.f32 %v197, 0.5
    %v214 = vadd.f32 %v198, 0.5
    %v215 = vadd.f32 %v199, 0.5
    %v216 = vadd.f32 %v200, 0.5
    %v217 = vadd.f32 %v201, 0.5
    %v218 = vadd.f32 %v202, 0.5
    %v219 = vadd.f32 %v203, 0.5
    %v220 = vadd.f32 %v204, 0.5
    %v221 = vadd.f32 %v205, 0.5
    %v222 = vadd.f32 %v206, 0.5
    %v223 = vadd.f32 %v207, 0.5
    %v224 = vadd.f32 %v208, 0.5
    %v225 = vadd.f32 %v209, 0.5
    %v226 = vadd.f32 %v210, 0.5
    %v227 = vld [vmem:[#allocation9] sm:$0xf]
    %v228 = vld [vmem:[#allocation9 + $0x4] sm:$0xf]
    %v229 = vld [vmem:[#allocation9 + $0x8] sm:$0xf]
    %v230 = vld [vmem:[#allocation9 + $0xc] sm:$0xf]
    %v231 = vld [vmem:[#allocation9 + $0x10] sm:$0xf]
    %v232 = vld [vmem:[#allocation9 + $0x14] sm:$0xf]
    %v233 = vld [vmem:[#allocation9 + $0x18] sm:$0xf]
    %v234 = vld [vmem:[#allocation9 + $0x1c] sm:$0xf]
    %v235 = vld [vmem:[#allocation9 + $0x20] sm:$0xf]
    %v236 = vld [vmem:[#allocation9 + $0x24] sm:$0xf]
    %v237 = vld [vmem:[#allocation9 + $0x28] sm:$0xf]
    %v238 = vld [vmem:[#allocation9 + $0x2c] sm:$0xf]
    %v239 = vld [vmem:[#allocation9 + $0x30] sm:$0xf]
    %v240 = vld [vmem:[#allocation9 + $0x34] sm:$0xf]
    %v241 = vld [vmem:[#allocation9 + $0x38] sm:$0xf]
    %v242 = vld [vmem:[#allocation9 + $0x3c] sm:$0xf]
    %v243 = vunpack.c.l.bf16 %v227
    %v244 = vunpack.c.l.bf16 %v228
    %v245 = vunpack.c.l.bf16 %v229
    %v246 = vunpack.c.l.bf16 %v230
    %v247 = vunpack.c.l.bf16 %v231
    %v248 = vunpack.c.l.bf16 %v232
    %v249 = vunpack.c.l.bf16 %v233
    %v250 = vunpack.c.l.bf16 %v234
    %v251 = vunpack.c.l.bf16 %v235
    %v252 = vunpack.c.l.bf16 %v236
    %v253 = vunpack.c.l.bf16 %v237
    %v254 = vunpack.c.l.bf16 %v238
    %v255 = vunpack.c.l.bf16 %v239
    %v256 = vunpack.c.l.bf16 %v240
    %v257 = vunpack.c.l.bf16 %v241
    %v258 = vunpack.c.l.bf16 %v242
    %v259 = vld [vmem:[#allocation2] sm:$0xff]
    %v260 = vmul.f32 %v243, %v211
    %v261 = vmul.f32 %v244, %v212
    %v262 = vmul.f32 %v245, %v213
    %v263 = vmul.f32 %v246, %v214
    %v264 = vmul.f32 %v247, %v215
    %v265 = vmul.f32 %v248, %v216
    %v266 = vmul.f32 %v249, %v217
    %v267 = vmul.f32 %v250, %v218
    %v268 = vmul.f32 %v251, %v219
    %v269 = vmul.f32 %v252, %v220
    %v270 = vmul.f32 %v253, %v221
    %v271 = vmul.f32 %v254, %v222
    %v272 = vmul.f32 %v255, %v223
    %v273 = vmul.f32 %v256, %v224
    %v274 = vmul.f32 %v257, %v225
    %v275 = vmul.f32 %v258, %v226
    %276 = vmatpush.xpose.msra.mxu0 %v275
    %277 = vmatpush.xpose.msra.mxu0 %v274
    %278 = vmatpush.xpose.msra.mxu0 %v273
    %279 = vmatpush.xpose.msra.mxu0 %v272
    %280 = vmatpush.xpose.msra.mxu0 %v271
    %281 = vmatpush.xpose.msra.mxu0 %v270
    %282 = vmatpush.xpose.msra.mxu0 %v269
    %283 = vmatpush.xpose.msra.mxu0 %v268
    %284 = vmatpush.xpose.msra.mxu0 %v267
    %285 = vmatpush.xpose.msra.mxu0 %v266
    %286 = vmatpush.xpose.msra.mxu0 %v265
    %287 = vmatpush.xpose.msra.mxu0 %v264
    %288 = vmatpush.xpose.msra.mxu0 %v263
    %289 = vmatpush.xpose.msra.mxu0 %v262
    %290 = vmatpush.xpose.msra.mxu0 %v261
    %291 = vmatpush.xpose.msra.mxu0 %v260
    %292 = vmatmul.f32.gmra.mxu0 %v129
    %v293 = vpop.f32.mrf.mxu0
    %v294 = vadd.f32 0.0, %v293
    %295 = vdwg.mxu0
    %v296 = vadd.f32 %v259, %v294
    %297 = vst [vmem:[#allocation2] sm:$0xff] %v296
    %v298 = vld [vmem:[#allocation10] sm:$0xf]
    %v299 = vld [vmem:[#allocation10 + $0x4] sm:$0xf]
    %v300 = vld [vmem:[#allocation10 + $0x8] sm:$0xf]
    %v301 = vld [vmem:[#allocation10 + $0xc] sm:$0xf]
    %v302 = vld [vmem:[#allocation10 + $0x10] sm:$0xf]
    %v303 = vld [vmem:[#allocation10 + $0x14] sm:$0xf]
    %v304 = vld [vmem:[#allocation10 + $0x18] sm:$0xf]
    %v305 = vld [vmem:[#allocation10 + $0x1c] sm:$0xf]
    %v306 = vld [vmem:[#allocation10 + $0x20] sm:$0xf]
    %v307 = vld [vmem:[#allocation10 + $0x24] sm:$0xf]
    %v308 = vld [vmem:[#allocation10 + $0x28] sm:$0xf]
    %v309 = vld [vmem:[#allocation10 + $0x2c] sm:$0xf]
    %v310 = vld [vmem:[#allocation10 + $0x30] sm:$0xf]
    %v311 = vld [vmem:[#allocation10 + $0x34] sm:$0xf]
    %v312 = vld [vmem:[#allocation10 + $0x38] sm:$0xf]
    %v313 = vld [vmem:[#allocation10 + $0x3c] sm:$0xf]
    %v314 = vunpack.c.l.bf16 %v298
    %v315 = vunpack.c.l.bf16 %v299
    %v316 = vunpack.c.l.bf16 %v300
    %v317 = vunpack.c.l.bf16 %v301
    %v318 = vunpack.c.l.bf16 %v302
    %v319 = vunpack.c.l.bf16 %v303
    %v320 = vunpack.c.l.bf16 %v304
    %v321 = vunpack.c.l.bf16 %v305
    %v322 = vunpack.c.l.bf16 %v306
    %v323 = vunpack.c.l.bf16 %v307
    %v324 = vunpack.c.l.bf16 %v308
    %v325 = vunpack.c.l.bf16 %v309
    %v326 = vunpack.c.l.bf16 %v310
    %v327 = vunpack.c.l.bf16 %v311
    %v328 = vunpack.c.l.bf16 %v312
    %v329 = vunpack.c.l.bf16 %v313
    %v330 = vmax.f32 %v314, 0.0
    %v331 = vmax.f32 %v315, 0.0
    %v332 = vmax.f32 %v316, 0.0
    %v333 = vmax.f32 %v317, 0.0
    %v334 = vmax.f32 %v318, 0.0
    %v335 = vmax.f32 %v319, 0.0
    %v336 = vmax.f32 %v320, 0.0
    %v337 = vmax.f32 %v321, 0.0
    %v338 = vmax.f32 %v322, 0.0
    %v339 = vmax.f32 %v323, 0.0
    %v340 = vmax.f32 %v324, 0.0
    %v341 = vmax.f32 %v325, 0.0
    %v342 = vmax.f32 %v326, 0.0
    %v343 = vmax.f32 %v327, 0.0
    %v344 = vmax.f32 %v328, 0.0
    %v345 = vmax.f32 %v329, 0.0
    %v346 = vand.u32 2147483647, %v314
    %v347 = vand.u32 2147483647, %v315
    %v348 = vand.u32 2147483647, %v316
    %v349 = vand.u32 2147483647, %v317
    %v350 = vand.u32 2147483647, %v318
    %v351 = vand.u32 2147483647, %v319
    %v352 = vand.u32 2147483647, %v320
    %v353 = vand.u32 2147483647, %v321
    %v354 = vand.u32 2147483647, %v322
    %v355 = vand.u32 2147483647, %v323
    %v356 = vand.u32 2147483647, %v324
    %v357 = vand.u32 2147483647, %v325
    %v358 = vand.u32 2147483647, %v326
    %v359 = vand.u32 2147483647, %v327
    %v360 = vand.u32 2147483647, %v328
    %v361 = vand.u32 2147483647, %v329
    %v362 = vsub.f32 0.0, %v346
    %v363 = vsub.f32 0.0, %v347
    %v364 = vsub.f32 0.0, %v348
    %v365 = vsub.f32 0.0, %v349
    %v366 = vsub.f32 0.0, %v350
    %v367 = vsub.f32 0.0, %v351
    %v368 = vsub.f32 0.0, %v352
    %v369 = vsub.f32 0.0, %v353
    %v370 = vsub.f32 0.0, %v354
    %v371 = vsub.f32 0.0, %v355
    %v372 = vsub.f32 0.0, %v356
    %v373 = vsub.f32 0.0, %v357
    %v374 = vsub.f32 0.0, %v358
    %v375 = vsub.f32 0.0, %v359
    %v376 = vsub.f32 0.0, %v360
    %v377 = vsub.f32 0.0, %v361
    %v378 = vmul.f32 %v362, 1.442695
    %v379 = vpow.pop %v378
    %v380 = vmul.f32 %v363, 1.442695
    %v381 = vpow.pop %v380
    %v382 = vmul.f32 %v364, 1.442695
    %v383 = vpow.pop %v382
    %v384 = vmul.f32 %v365, 1.442695
    %v385 = vpow.pop %v384
    %v386 = vmul.f32 %v366, 1.442695
    %v387 = vpow.pop %v386
    %v388 = vmul.f32 %v367, 1.442695
    %v389 = vpow.pop %v388
    %v390 = vmul.f32 %v368, 1.442695
    %v391 = vpow.pop %v390
    %v392 = vmul.f32 %v369, 1.442695
    %v393 = vpow.pop %v392
    %v394 = vmul.f32 %v370, 1.442695
    %v395 = vpow.pop %v394
    %v396 = vmul.f32 %v371, 1.442695
    %v397 = vpow.pop %v396
    %v398 = vmul.f32 %v372, 1.442695
    %v399 = vpow.pop %v398
    %v400 = vmul.f32 %v373, 1.442695
    %v401 = vpow.pop %v400
    %v402 = vmul.f32 %v374, 1.442695
    %v403 = vpow.pop %v402
    %v404 = vmul.f32 %v375, 1.442695
    %v405 = vpow.pop %v404
    %v406 = vmul.f32 %v376, 1.442695
    %v407 = vpow.pop %v406
    %v408 = vmul.f32 %v377, 1.442695
    %v409 = vpow.pop %v408
    %v410 = vadd.f32 %v379, 1.0
    %v411 = vlog2.pop %v410
    %v412 = vmul.f32 %v411, 0.6931472
    %v413 = vmul.f32 -0.5, %v379
    %v414 = vadd.f32 %v413, 1.0
    %v415 = vmul.f32 %v414, %v379
    %v416 = vand.u32 2147483647, %v379
    %vm417 = vcmp.lt.f32.partialorder %v416, 0.0004427343
    %v418 = vsel %vm417, %v415, %v412
    %v419 = vadd.f32 %v381, 1.0
    %v420 = vlog2.pop %v419
    %v421 = vmul.f32 %v420, 0.6931472
    %v422 = vmul.f32 -0.5, %v381
    %v423 = vadd.f32 %v422, 1.0
    %v424 = vmul.f32 %v423, %v381
    %v425 = vand.u32 2147483647, %v381
    %vm426 = vcmp.lt.f32.partialorder %v425, 0.0004427343
    %v427 = vsel %vm426, %v424, %v421
    %v428 = vadd.f32 %v383, 1.0
    %v429 = vlog2.pop %v428
    %v430 = vmul.f32 %v429, 0.6931472
    %v431 = vmul.f32 -0.5, %v383
    %v432 = vadd.f32 %v431, 1.0
    %v433 = vmul.f32 %v432, %v383
    %v434 = vand.u32 2147483647, %v383
    %vm435 = vcmp.lt.f32.partialorder %v434, 0.0004427343
    %v436 = vsel %vm435, %v433, %v430
    %v437 = vadd.f32 %v385, 1.0
    %v438 = vlog2.pop %v437
    %v439 = vmul.f32 %v438, 0.6931472
    %v440 = vmul.f32 -0.5, %v385
    %v441 = vadd.f32 %v440, 1.0
    %v442 = vmul.f32 %v441, %v385
    %v443 = vand.u32 2147483647, %v385
    %vm444 = vcmp.lt.f32.partialorder %v443, 0.0004427343
    %v445 = vsel %vm444, %v442, %v439
    %v446 = vadd.f32 %v387, 1.0
    %v447 = vlog2.pop %v446
    %v448 = vmul.f32 %v447, 0.6931472
    %v449 = vmul.f32 -0.5, %v387
    %v450 = vadd.f32 %v449, 1.0
    %v451 = vmul.f32 %v450, %v387
    %v452 = vand.u32 2147483647, %v387
    %vm453 = vcmp.lt.f32.partialorder %v452, 0.0004427343
    %v454 = vsel %vm453, %v451, %v448
    %v455 = vadd.f32 %v389, 1.0
    %v456 = vlog2.pop %v455
    %v457 = vmul.f32 %v456, 0.6931472
    %v458 = vmul.f32 -0.5, %v389
    %v459 = vadd.f32 %v458, 1.0
    %v460 = vmul.f32 %v459, %v389
    %v461 = vand.u32 2147483647, %v389
    %vm462 = vcmp.lt.f32.partialorder %v461, 0.0004427343
    %v463 = vsel %vm462, %v460, %v457
    %v464 = vadd.f32 %v391, 1.0
    %v465 = vlog2.pop %v464
    %v466 = vmul.f32 %v465, 0.6931472
    %v467 = vmul.f32 -0.5, %v391
    %v468 = vadd.f32 %v467, 1.0
    %v469 = vmul.f32 %v468, %v391
    %v470 = vand.u32 2147483647, %v391
    %vm471 = vcmp.lt.f32.partialorder %v470, 0.0004427343
    %v472 = vsel %vm471, %v469, %v466
    %v473 = vadd.f32 %v393, 1.0
    %v474 = vlog2.pop %v473
    %v475 = vmul.f32 %v474, 0.6931472
    %v476 = vmul.f32 -0.5, %v393
    %v477 = vadd.f32 %v476, 1.0
    %v478 = vmul.f32 %v477, %v393
    %v479 = vand.u32 2147483647, %v393
    %vm480 = vcmp.lt.f32.partialorder %v479, 0.0004427343
    %v481 = vsel %vm480, %v478, %v475
    %v482 = vadd.f32 %v395, 1.0
    %v483 = vlog2.pop %v482
    %v484 = vmul.f32 %v483, 0.6931472
    %v485 = vmul.f32 -0.5, %v395
    %v486 = vadd.f32 %v485, 1.0
    %v487 = vmul.f32 %v486, %v395
    %v488 = vand.u32 2147483647, %v395
    %vm489 = vcmp.lt.f32.partialorder %v488, 0.0004427343
    %v490 = vsel %vm489, %v487, %v484
    %v491 = vadd.f32 %v397, 1.0
    %v492 = vlog2.pop %v491
    %v493 = vmul.f32 %v492, 0.6931472
    %v494 = vmul.f32 -0.5, %v397
    %v495 = vadd.f32 %v494, 1.0
    %v496 = vmul.f32 %v495, %v397
    %v497 = vand.u32 2147483647, %v397
    %vm498 = vcmp.lt.f32.partialorder %v497, 0.0004427343
    %v499 = vsel %vm498, %v496, %v493
    %v500 = vadd.f32 %v399, 1.0
    %v501 = vlog2.pop %v500
    %v502 = vmul.f32 %v501, 0.6931472
    %v503 = vmul.f32 -0.5, %v399
    %v504 = vadd.f32 %v503, 1.0
    %v505 = vmul.f32 %v504, %v399
    %v506 = vand.u32 2147483647, %v399
    %vm507 = vcmp.lt.f32.partialorder %v506, 0.0004427343
    %v508 = vsel %vm507, %v505, %v502
    %v509 = vadd.f32 %v401, 1.0
    %v510 = vlog2.pop %v509
    %v511 = vmul.f32 %v510, 0.6931472
    %v512 = vmul.f32 -0.5, %v401
    %v513 = vadd.f32 %v512, 1.0
    %v514 = vmul.f32 %v513, %v401
    %v515 = vand.u32 2147483647, %v401
    %vm516 = vcmp.lt.f32.partialorder %v515, 0.0004427343
    %v517 = vsel %vm516, %v514, %v511
    %v518 = vadd.f32 %v403, 1.0
    %v519 = vlog2.pop %v518
    %v520 = vmul.f32 %v519, 0.6931472
    %v521 = vmul.f32 -0.5, %v403
    %v522 = vadd.f32 %v521, 1.0
    %v523 = vmul.f32 %v522, %v403
    %v524 = vand.u32 2147483647, %v403
    %vm525 = vcmp.lt.f32.partialorder %v524, 0.0004427343
    %v526 = vsel %vm525, %v523, %v520
    %v527 = vadd.f32 %v405, 1.0
    %v528 = vlog2.pop %v527
    %v529 = vmul.f32 %v528, 0.6931472
    %v530 = vmul.f32 -0.5, %v405
    %v531 = vadd.f32 %v530, 1.0
    %v532 = vmul.f32 %v531, %v405
    %v533 = vand.u32 2147483647, %v405
    %vm534 = vcmp.lt.f32.partialorder %v533, 0.0004427343
    %v535 = vsel %vm534, %v532, %v529
    %v536 = vadd.f32 %v407, 1.0
    %v537 = vlog2.pop %v536
    %v538 = vmul.f32 %v537, 0.6931472
    %v539 = vmul.f32 -0.5, %v407
    %v540 = vadd.f32 %v539, 1.0
    %v541 = vmul.f32 %v540, %v407
    %v542 = vand.u32 2147483647, %v407
    %vm543 = vcmp.lt.f32.partialorder %v542, 0.0004427343
    %v544 = vsel %vm543, %v541, %v538
    %v545 = vadd.f32 %v409, 1.0
    %v546 = vlog2.pop %v545
    %v547 = vmul.f32 %v546, 0.6931472
    %v548 = vmul.f32 -0.5, %v409
    %v549 = vadd.f32 %v548, 1.0
    %v550 = vmul.f32 %v549, %v409
    %v551 = vand.u32 2147483647, %v409
    %vm552 = vcmp.lt.f32.partialorder %v551, 0.0004427343
    %v553 = vsel %vm552, %v550, %v547
    %v554 = vadd.f32 %v330, %v418
    %v555 = vadd.f32 %v331, %v427
    %v556 = vadd.f32 %v332, %v436
    %v557 = vadd.f32 %v333, %v445
    %v558 = vadd.f32 %v334, %v454
    %v559 = vadd.f32 %v335, %v463
    %v560 = vadd.f32 %v336, %v472
    %v561 = vadd.f32 %v337, %v481
    %v562 = vadd.f32 %v338, %v490
    %v563 = vadd.f32 %v339, %v499
    %v564 = vadd.f32 %v340, %v508
    %v565 = vadd.f32 %v341, %v517
    %v566 = vadd.f32 %v342, %v526
    %v567 = vadd.f32 %v343, %v535
    %v568 = vadd.f32 %v344, %v544
    %v569 = vadd.f32 %v345, %v553
    %v570 = vmul.f32 %v554, %v554
    %v571 = vmul.f32 %v555, %v555
    %v572 = vmul.f32 %v556, %v556
    %v573 = vmul.f32 %v557, %v557
    %v574 = vmul.f32 %v558, %v558
    %v575 = vmul.f32 %v559, %v559
    %v576 = vmul.f32 %v560, %v560
    %v577 = vmul.f32 %v561, %v561
    %v578 = vmul.f32 %v562, %v562
    %v579 = vmul.f32 %v563, %v563
    %v580 = vmul.f32 %v564, %v564
    %v581 = vmul.f32 %v565, %v565
    %v582 = vmul.f32 %v566, %v566
    %v583 = vmul.f32 %v567, %v567
    %v584 = vmul.f32 %v568, %v568
    %v585 = vmul.f32 %v569, %v569
    %v586 = vmul.f32 %v211, %v570
    %v587 = vmul.f32 %v212, %v571
    %v588 = vmul.f32 %v213, %v572
    %v589 = vmul.f32 %v214, %v573
    %v590 = vmul.f32 %v215, %v574
    %v591 = vmul.f32 %v216, %v575
    %v592 = vmul.f32 %v217, %v576
    %v593 = vmul.f32 %v218, %v577
    %v594 = vmul.f32 %v219, %v578
    %v595 = vmul.f32 %v220, %v579
    %v596 = vmul.f32 %v221, %v580
    %v597 = vmul.f32 %v222, %v581
    %v598 = vmul.f32 %v223, %v582
    %v599 = vmul.f32 %v224, %v583
    %v600 = vmul.f32 %v225, %v584
    %v601 = vmul.f32 %v226, %v585
    %v602 = vmul.f32 %v129, %v129
    %v603 = vsub.f32 1.0, %v211
    %v604 = vsub.f32 1.0, %v212
    %v605 = vsub.f32 1.0, %v213
    %v606 = vsub.f32 1.0, %v214
    %v607 = vsub.f32 1.0, %v215
    %v608 = vsub.f32 1.0, %v216
    %v609 = vsub.f32 1.0, %v217
    %v610 = vsub.f32 1.0, %v218
    %v611 = vsub.f32 1.0, %v219
    %v612 = vsub.f32 1.0, %v220
    %v613 = vsub.f32 1.0, %v221
    %v614 = vsub.f32 1.0, %v222
    %v615 = vsub.f32 1.0, %v223
    %v616 = vsub.f32 1.0, %v224
    %v617 = vsub.f32 1.0, %v225
    %v618 = vsub.f32 1.0, %v226
    %v619 = vmul.f32 %v211, %v603
    %v620 = vmul.f32 %v212, %v604
    %v621 = vmul.f32 %v213, %v605
    %v622 = vmul.f32 %v214, %v606
    %v623 = vmul.f32 %v215, %v607
    %v624 = vmul.f32 %v216, %v608
    %v625 = vmul.f32 %v217, %v609
    %v626 = vmul.f32 %v218, %v610
    %v627 = vmul.f32 %v219, %v611
    %v628 = vmul.f32 %v220, %v612
    %v629 = vmul.f32 %v221, %v613
    %v630 = vmul.f32 %v222, %v614
    %v631 = vmul.f32 %v223, %v615
    %v632 = vmul.f32 %v224, %v616
    %v633 = vmul.f32 %v225, %v617
    %v634 = vmul.f32 %v226, %v618
    %v635 = vmul.f32 %v243, %v243
    %v636 = vmul.f32 %v244, %v244
    %v637 = vmul.f32 %v245, %v245
    %v638 = vmul.f32 %v246, %v246
    %v639 = vmul.f32 %v247, %v247
    %v640 = vmul.f32 %v248, %v248
    %v641 = vmul.f32 %v249, %v249
    %v642 = vmul.f32 %v250, %v250
    %v643 = vmul.f32 %v251, %v251
    %v644 = vmul.f32 %v252, %v252
    %v645 = vmul.f32 %v253, %v253
    %v646 = vmul.f32 %v254, %v254
    %v647 = vmul.f32 %v255, %v255
    %v648 = vmul.f32 %v256, %v256
    %v649 = vmul.f32 %v257, %v257
    %v650 = vmul.f32 %v258, %v258
    %v651 = vmul.f32 %v619, %v635
    %v652 = vmul.f32 %v620, %v636
    %v653 = vmul.f32 %v621, %v637
    %v654 = vmul.f32 %v622, %v638
    %v655 = vmul.f32 %v623, %v639
    %v656 = vmul.f32 %v624, %v640
    %v657 = vmul.f32 %v625, %v641
    %v658 = vmul.f32 %v626, %v642
    %v659 = vmul.f32 %v627, %v643
    %v660 = vmul.f32 %v628, %v644
    %v661 = vmul.f32 %v629, %v645
    %v662 = vmul.f32 %v630, %v646
    %v663 = vmul.f32 %v631, %v647
    %v664 = vmul.f32 %v632, %v648
    %v665 = vmul.f32 %v633, %v649
    %v666 = vmul.f32 %v634, %v650
    %667 = vmatpush.xpose.msra.mxu0 %v666
    %668 = vmatpush.xpose.msra.mxu0 %v665
    %669 = vmatpush.xpose.msra.mxu0 %v664
    %670 = vmatpush.xpose.msra.mxu0 %v663
    %671 = vmatpush.xpose.msra.mxu0 %v662
    %672 = vmatpush.xpose.msra.mxu0 %v661
    %673 = vmatpush.xpose.msra.mxu0 %v660
    %674 = vmatpush.xpose.msra.mxu0 %v659
    %675 = vmatpush.xpose.msra.mxu0 %v658
    %676 = vmatpush.xpose.msra.mxu0 %v657
    %677 = vmatpush.xpose.msra.mxu0 %v656
    %678 = vmatpush.xpose.msra.mxu0 %v655
    %679 = vmatpush.xpose.msra.mxu0 %v654
    %680 = vmatpush.xpose.msra.mxu0 %v653
    %681 = vmatpush.xpose.msra.mxu0 %v652
    %682 = vmatpush.xpose.msra.mxu0 %v651
    %683 = vmatmul.f32.gmra.mxu0 %v602
    %v684 = vpop.f32.mrf.mxu0
    %v685 = vadd.f32 0.0, %v684
    %686 = vdwg.mxu0
    %687 = vmatpush.xpose.msra.mxu0 %v601
    %688 = vmatpush.xpose.msra.mxu0 %v600
    %689 = vmatpush.xpose.msra.mxu0 %v599
    %690 = vmatpush.xpose.msra.mxu0 %v598
    %691 = vmatpush.xpose.msra.mxu0 %v597
    %692 = vmatpush.xpose.msra.mxu0 %v596
    %693 = vmatpush.xpose.msra.mxu0 %v595
    %694 = vmatpush.xpose.msra.mxu0 %v594
    %695 = vmatpush.xpose.msra.mxu0 %v593
    %696 = vmatpush.xpose.msra.mxu0 %v592
    %697 = vmatpush.xpose.msra.mxu0 %v591
    %698 = vmatpush.xpose.msra.mxu0 %v590
    %699 = vmatpush.xpose.msra.mxu0 %v589
    %700 = vmatpush.xpose.msra.mxu0 %v588
    %701 = vmatpush.xpose.msra.mxu0 %v587
    %702 = vmatpush.xpose.msra.mxu0 %v586
    %703 = vmatmul.f32.gmra.mxu0 %v130
    %v704 = vpop.f32.mrf.mxu0
    %v705 = vadd.f32 %v685, %v704
    %706 = vdwg.mxu0
    %v707 = vld [vmem:[#allocation3] sm:$0xff]
    %v708 = vadd.f32 %v707, %v705
    %709 = vst [vmem:[#allocation3] sm:$0xff] %v708
    // Predicated region
    $region62: #{tpu_custom_call.1} parent=1 // pred_check
      %p710 = pneg %p118
    $region63: #{tpu_custom_call.1} parent=1 // pred_check_branch
      %712 = sbr.rel (%p710) target = $region65
    $region64: #{tpu_custom_call.1} parent=1 // pred_region
      %v713 = vld [vmem:[#allocation2] sm:$0xff]
      %v714 = vld [vmem:[%s5] sm:$0x1]
      %v716 = vperm.slane %v714, 0
      %v718 = vadd.f32 %v713, %v716
      %v719 = vld [vmem:[#allocation3] sm:$0xff]
      %v720 = vld [vmem:[%s6] sm:$0x1]
      %v722 = vperm.slane %v720, 0
      %v724 = vadd.f32 %v719, %v722
      %v725 = vmax.f32 %v724, 0.0
      %v726 = vrsqrt.pop %v725
      %v727 = vmul.f32 %v726, %v725
      %v728 = vmul.f32 %v727, %v726
      %v729 = vmul.f32 0.5, %v728
      %v730 = vsub.f32 1.5, %v729
      %v731 = vmul.f32 %v726, %v730
      %v732 = vmul.f32 %v725, %v731
      %vm733 = vcmp.eq.f32.partialorder %v725, inf
      %v734 = vsel %vm733, %v725, %v732
      %vm735 = vcmp.eq.f32.partialorder %v725, 0.0
      %v736 = vand.u32 %v725, 2147483648
      %v737 = vsel %vm735, %v736, %v734
      %v738 = vld [vmem:[#allocation13] sm:$0xff]
      %v739 = vmul.f32 %v737, %v738
      %v740 = vadd.f32 %v718, %v739
      %741 = vst [vmem:[#allocation15] sm:$0xff] %v740
    $region65: #{tpu_custom_call.1} parent=1 // pred_fallthru
      _
    // Predicated region
    $region66: #{tpu_custom_call.1} parent=1 // pred_check
      _
    $region67: #{tpu_custom_call.1} parent=1 // pred_check_branch
      %743 = sbr.rel (0) target = $region69
    $region68: #{tpu_custom_call.1} parent=1 // pred_region
      %745 = vsyncadd [#allocation6], 0
      %s747 = sshll.u32 [#allocation15], 4
      %s748 = int_to_ptr.vmem [resolvable:$true] %s747
      %s749 = sshll.u32 %s8, 4
      %s750 = int_to_ptr.hbm [resolvable:$true] %s749
      %752 = dma.vmem_to_hbm [thread:$0]  %s748, 128, %s750, [#allocation6]
    $region69: #{tpu_custom_call.1} parent=1 // pred_fallthru
      _
    // Predicated region
    $region70: #{tpu_custom_call.1} parent=1 // pred_check
      _
    $region71: #{tpu_custom_call.1} parent=1 // pred_check_branch
      %754 = sbr.rel (0) target = $region73
    $region72: #{tpu_custom_call.1} parent=1 // pred_region
      %756 = dma.done [#allocation6], 128
    $region73: #{tpu_custom_call.1} parent=1 // pred_fallthru
      _
    %757 = vsyncpa [#allocation5], 1
    %758 = vsyncpa [#allocation8], 1
    %759 = vsyncpa [#allocation11], 1
    %760 = vsyncpa [#allocation14], 1
    %761 = vsyncpa [#allocation6], 1

</llo_original>
